<compile_context>
chip_gen: v7x
topology: tpu7x:2x2x1
jax: 0.10.0
libtpu: 0.0.40
codegen_flags: <defaults>
</compile_context>

<pallas_src>
import jax
import jax.numpy as jnp
from jax.experimental import pallas as pl
from jax.experimental.pallas import tpu as pltpu

MAX_LENGTH = 10
_NEG = -1e30          # bias for padded attention lanes: exp underflows to exactly 0


def _round_up(x, m):
    return ((x + m - 1) // m) * m


def atten_decoder_kernel(
    e_ref,       # VMEM (T, H)         embedded input tokens (eval-mode dropout)
    h0_ref,      # VMEM (1, Hp)        initial hidden, zero-padded to Hp lanes
    enc_ref,     # VMEM (Lp, H)        encoder_outputs, zero-padded to Lp rows
    we_ref,      # VMEM (H, Lp+Hp)     [attn_W_emb | comb_W_emb]   (128-lane segments)
    be_ref,      # VMEM (1, Lp+Hp)     [attn_b (pad=-1e30) | comb_b]
    wh_ref,      # VMEM (Hp, Lp+3Hp)   [attn_W_hid | W_hh_r | W_hh_z | W_hh_n]
    bh_ref,      # VMEM (1, Lp+3Hp)    [0 | b_hh_r | b_hh_z | b_hh_n]
    combh_ref,   # VMEM (H, Hp)        comb_W_applied
    wih_ref,     # VMEM (Hp, 3Hp)      [W_ih_r | W_ih_z | W_ih_n]
    bih_ref,     # VMEM (1, 3Hp)
    outw_ref,    # VMEM (Hp, V)        out.weight^T (rows zero-padded H..Hp)
    outb_ref,    # VMEM (1, V)
    result_ref,  # out  (T, V)         per-step log-softmax
    hfin_ref,    # out  (1, Hp)        final hidden (padded)
    attnw_ref,   # out  (T, Lp)        per-step attention weights (padded)
    h_scr,       # scratch VMEM (T, Hp) per-step hidden states for batched out-proj
):
    T = e_ref.shape[0]
    Hp = h0_ref.shape[1]
    Lp = enc_ref.shape[0]

    # ---- token-only projection: hoisted out of the recurrence, batched over T ----
    #   e_proj[:, :Lp]      = embeded @ attn_W[:H] + attn_b   (padded lanes = -1e30)
    #   e_proj[:, Lp:Lp+Hp] = embeded @ comb_W[:H] + comb_b
    e_proj = jnp.dot(e_ref[...], we_ref[...],
                     preferred_element_type=jnp.float32) + be_ref[...]       # (T, Lp+Hp)

    h = h0_ref[...]                                                          # (1, Hp)
    for t in range(T):       # static trip count -> fully unrolled serial chain
        # hidden projection: attn hidden half + all three GRU hidden gates
        h_proj = jnp.dot(h, wh_ref[...],
                         preferred_element_type=jnp.float32) + bh_ref[...]   # (1, Lp+3Hp)
        e_t = e_proj[t:t + 1, :]                                             # (1, Lp+Hp)

        # --- attn_weight = softmax(attn(cat(embeded, hidden))) ; pad lanes -> 0 ---
        logits = e_t[:, 0:Lp] + h_proj[:, 0:Lp]
        m = jnp.max(logits, axis=-1, keepdims=True)
        ex = jnp.exp(logits - m)
        attn_w = ex / jnp.sum(ex, axis=-1, keepdims=True)                    # (1, Lp)
        attnw_ref[pl.ds(t, 1), :] = attn_w          # VMEM-resident output, DMA'd once

        # --- attn_applied = attn_weight @ encoder_outputs ---
        applied = jnp.dot(attn_w, enc_ref[...],
                          preferred_element_type=jnp.float32)                # (1, H)

        # --- atten = relu(attn_combine(cat(embeded, attn_applied))) ---
        atten = e_t[:, Lp:Lp + Hp] + jnp.dot(applied, combh_ref[...],
                                             preferred_element_type=jnp.float32)
        atten = jnp.maximum(atten, 0.0)                                      # (1, Hp)

        # --- GRU cell (PyTorch gate order r, z, n); gates on 128-lane boundaries ---
        gx = jnp.dot(atten, wih_ref[...],
                     preferred_element_type=jnp.float32) + bih_ref[...]      # (1, 3Hp)
        gh = h_proj[:, Lp:Lp + 3 * Hp]                                       # (1, 3Hp)
        r = jax.nn.sigmoid(gx[:, 0:Hp] + gh[:, 0:Hp])
        z = jax.nn.sigmoid(gx[:, Hp:2 * Hp] + gh[:, Hp:2 * Hp])
        n = jnp.tanh(gx[:, 2 * Hp:3 * Hp] + r * gh[:, 2 * Hp:3 * Hp])
        h = (1.0 - z) * n + z * h                                            # (1, Hp)
        h_scr[pl.ds(t, 1), :] = h

    hfin_ref[...] = h           # single write of the final hidden

    # ---- output projection + log_softmax: hoisted out of the recurrence, batched ----
    logits_all = jnp.dot(h_scr[...], outw_ref[...],
                         preferred_element_type=jnp.float32) + outb_ref[...]  # (T, V)
    lm = jnp.max(logits_all, axis=-1, keepdims=True)
    shifted = logits_all - lm
    lse = jnp.log(jnp.sum(jnp.exp(shifted), axis=-1, keepdims=True))
    result_ref[...] = shifted - lse


def _prepare_inputs(tokens, hidden, encoder_outputs, params):
    """Embed tokens, fuse same-LHS weights and pad each segment to 128-lane blocks."""
    H = hidden.shape[-1]
    L = encoder_outputs.shape[0]
    V = params["emb"].shape[0]
    Hp = _round_up(H, 128)
    Lp = _round_up(L, 128)
    f32 = jnp.float32

    # Embedding lookup (clamped: no HW OOB check on TPU) + eval-mode dropout identity.
    # TODO(synk): nn.Dropout(p=0.1) in train mode would need pltpu.prng_* masking.
    toks = jnp.clip(tokens.astype(jnp.int32), 0, V - 1)
    E = jnp.take(params["emb"].astype(f32), toks, axis=0)                    # (T, H)

    h0 = jnp.zeros((1, Hp), f32).at[:, :H].set(hidden.reshape(1, H).astype(f32))
    enc = jnp.zeros((Lp, H), f32).at[:L, :].set(encoder_outputs.astype(f32))

    aw, ab = params["attn_w_t"].astype(f32), params["attn_b"].astype(f32)
    cw, cb = params["comb_w_t"].astype(f32), params["comb_b"].astype(f32)
    wih, bih = params["w_ih_t"].astype(f32), params["b_ih"].astype(f32)
    whh, bhh = params["w_hh_t"].astype(f32), params["b_hh"].astype(f32)
    ow, ob = params["out_w_t"].astype(f32), params["out_b"].astype(f32)

    # embeded-side fusion: [attn | combine], each segment in its own 128-lane block.
    w_e = (jnp.zeros((H, Lp + Hp), f32)
           .at[:, :L].set(aw[:H])
           .at[:, Lp:Lp + H].set(cw[:H]))
    b_e = (jnp.zeros((1, Lp + Hp), f32)
           .at[:, :L].set(ab)
           .at[:, L:Lp].set(_NEG)                 # mask padded attention lanes
           .at[:, Lp:Lp + H].set(cb))

    # hidden-side fusion: [attn | GRU r | GRU z | GRU n], hidden padded to Hp rows.
    w_h = jnp.zeros((Hp, Lp + 3 * Hp), f32).at[:H, :L].set(aw[H:])
    b_h = jnp.zeros((1, Lp + 3 * Hp), f32)
    w_ih_p = jnp.zeros((Hp, 3 * Hp), f32)
    b_ih_p = jnp.zeros((1, 3 * Hp), f32)
    for g in range(3):
        w_h = w_h.at[:H, Lp + g * Hp:Lp + g * Hp + H].set(whh[:, g * H:(g + 1) * H])
        b_h = b_h.at[:, Lp + g * Hp:Lp + g * Hp + H].set(bhh[:, g * H:(g + 1) * H])
        w_ih_p = w_ih_p.at[:H, g * Hp:g * Hp + H].set(wih[:, g * H:(g + 1) * H])
        b_ih_p = b_ih_p.at[:, g * Hp:g * Hp + H].set(bih[:, g * H:(g + 1) * H])

    comb_h = jnp.zeros((H, Hp), f32).at[:, :H].set(cw[H:])
    out_w = jnp.zeros((Hp, V), f32).at[:H, :].set(ow)
    return E, h0, enc, w_e, b_e, w_h, b_h, comb_h, w_ih_p, b_ih_p, out_w, ob, Hp, Lp


@jax.jit
def atten_decoder_decode(tokens, hidden, encoder_outputs, params):
    """Run T teacher-forced decode steps in ONE grid-less pallas_call.

    tokens: (T,) int32; hidden: (1,1,H) f32; encoder_outputs: (L,H) f32.
    Returns (results (T,V) log-softmax, final hidden (1,1,H), attn_weights (T,L)).
    """
    T = tokens.shape[0]
    H = hidden.shape[-1]
    L = encoder_outputs.shape[0]
    V = params["emb"].shape[0]

    (E, h0, enc, w_e, b_e, w_h, b_h, comb_h, w_ih, b_ih, out_w, out_b,
     Hp, Lp) = _prepare_inputs(tokens, hidden, encoder_outputs, params)

    out_shape = (
        jax.ShapeDtypeStruct((T, V), jnp.float32),      # per-step log-probs
        jax.ShapeDtypeStruct((1, Hp), jnp.float32),     # final hidden (padded)
        jax.ShapeDtypeStruct((T, Lp), jnp.float32),     # attention weights (padded)
    )
    results, h_fin, attn_w = pl.pallas_call(
        atten_decoder_kernel,
        out_shape=out_shape,
        scratch_shapes=[pltpu.VMEM((T, Hp), jnp.float32)],
    )(E, h0, enc, w_e, b_e, w_h, b_h, comb_h, w_ih, b_ih, out_w, out_b)

    return results, h_fin[:, :H].reshape(1, 1, H), attn_w[:, :L]


def atten_decoder_forward(token, hidden, encoder_outputs, params):
    """Single-step API matching the PyTorch module forward (T = 1)."""
    return atten_decoder_decode(token.reshape((1,)).astype(jnp.int32),
                                hidden, encoder_outputs, params)


def reference_forward(token, hidden, enc, p):
    """Pure-JAX reference mirroring the PyTorch forward (eval mode)."""
    H = hidden.shape[-1]
    emb = p["emb"][token.reshape(())][None, :]               # (1, H)
    hid = hidden.reshape((1, H))
    cat1 = jnp.concatenate([emb, hid], axis=-1)
    aw = jax.nn.softmax(cat1 @ p["attn_w_t"] + p["attn_b"], axis=-1)
    applied = aw @ enc
    cat2 = jnp.concatenate([emb, applied], axis=-1)
    at = jax.nn.relu(cat2 @ p["comb_w_t"] + p["comb_b"])
    gx = at @ p["w_ih_t"] + p["b_ih"]
    gh = hid @ p["w_hh_t"] + p["b_hh"]
    r = jax.nn.sigmoid(gx[:, :H] + gh[:, :H])
    z = jax.nn.sigmoid(gx[:, H:2 * H] + gh[:, H:2 * H])
    n = jnp.tanh(gx[:, 2 * H:] + r * gh[:, 2 * H:])
    hn = (1.0 - z) * n + z * hid
    res = jax.nn.log_softmax(hn @ p["out_w_t"] + p["out_b"], axis=-1)
    return res, hn.reshape((1, 1, H)), aw


def init_params(key, vocab_size, hidden_size, max_length):
    V, H, L = vocab_size, hidden_size, max_length
    ks = jax.random.split(key, 10)
    s = 0.1
    return {
        "emb":      jax.random.normal(ks[0], (V, H), jnp.float32) * s,
        "attn_w_t": jax.random.normal(ks[1], (2 * H, L), jnp.float32) * s,
        "attn_b":   jax.random.normal(ks[2], (1, L), jnp.float32) * s,
        "comb_w_t": jax.random.normal(ks[3], (2 * H, H), jnp.float32) * s,
        "comb_b":   jax.random.normal(ks[4], (1, H), jnp.float32) * s,
        "w_ih_t":   jax.random.normal(ks[5], (H, 3 * H), jnp.float32) * s,
        "b_ih":     jax.random.normal(ks[6], (1, 3 * H), jnp.float32) * s,
        "w_hh_t":   jax.random.normal(ks[7], (H, 3 * H), jnp.float32) * s,
        "b_hh":     jax.random.normal(ks[8], (1, 3 * H), jnp.float32) * s,
        "out_w_t":  jax.random.normal(ks[9], (H, V), jnp.float32) * s,
        "out_b":    jnp.zeros((1, V), jnp.float32),
    }


if __name__ == "__main__":
    vocab_size, hidden_size, max_length = 128, 32, MAX_LENGTH

    key = jax.random.PRNGKey(0)
    k_p, k_h, k_e, k_t = jax.random.split(key, 4)

    params = init_params(k_p, vocab_size, hidden_size, max_length)
    hidden = jax.random.normal(k_h, (1, 1, hidden_size), jnp.float32)
    encoder_outputs = jax.random.normal(k_e, (max_length, hidden_size), jnp.float32)

    # --- single step: exact module forward ---
    token = jax.random.randint(k_t, (1, 1), 0, vocab_size, dtype=jnp.int32)
    result, new_hidden, attn_weight = atten_decoder_forward(
        token, hidden, encoder_outputs, params)
    jax.block_until_ready((result, new_hidden, attn_weight))

    r_ref, h_ref, a_ref = reference_forward(token, hidden, encoder_outputs, params)
    assert result.shape == (1, vocab_size)
    assert new_hidden.shape == (1, 1, hidden_size)
    assert attn_weight.shape == (1, max_length)
    assert jnp.allclose(result, r_ref, atol=1e-5, rtol=1e-5)
    assert jnp.allclose(new_hidden, h_ref, atol=1e-5, rtol=1e-5)
    assert jnp.allclose(attn_weight, a_ref, atol=1e-5, rtol=1e-5)

    # --- multi-step teacher-forced decode: ONE kernel invocation for all steps ---
    T = 6
    tokens = jax.random.randint(jax.random.PRNGKey(7), (T,), 0, vocab_size,
                                dtype=jnp.int32)
    results, h_fin, attn_ws = atten_decoder_decode(
        tokens, hidden, encoder_outputs, params)
    jax.block_until_ready((results, h_fin, attn_ws))

    h_cur = hidden
    for i in range(T):
        r_i, h_cur, a_i = reference_forward(tokens[i].reshape(1, 1), h_cur,
                                            encoder_outputs, params)
        assert jnp.allclose(results[i:i + 1], r_i, atol=1e-5, rtol=1e-5)
        assert jnp.allclose(attn_ws[i:i + 1], a_i, atol=1e-5, rtol=1e-5)
    assert jnp.allclose(h_fin, h_cur, atol=1e-5, rtol=1e-5)

    print("KERNEL_OK")
</pallas_src>

<mosaic_0001>
module attributes {stable_mosaic.version = 11 : i64} {
  func.func @atten_decoder_kernel(%arg0: memref<1x32xf32, #tpu.memory_space<vmem>>, %arg1: memref<1x128xf32, #tpu.memory_space<vmem>>, %arg2: memref<128x32xf32, #tpu.memory_space<vmem>>, %arg3: memref<32x256xf32, #tpu.memory_space<vmem>>, %arg4: memref<1x256xf32, #tpu.memory_space<vmem>>, %arg5: memref<128x512xf32, #tpu.memory_space<vmem>>, %arg6: memref<1x512xf32, #tpu.memory_space<vmem>>, %arg7: memref<32x128xf32, #tpu.memory_space<vmem>>, %arg8: memref<128x384xf32, #tpu.memory_space<vmem>>, %arg9: memref<1x384xf32, #tpu.memory_space<vmem>>, %arg10: memref<128x128xf32, #tpu.memory_space<vmem>>, %arg11: memref<1x128xf32, #tpu.memory_space<vmem>>, %arg12: memref<1x128xf32, #tpu.memory_space<vmem>>, %arg13: memref<1x128xf32, #tpu.memory_space<vmem>>, %arg14: memref<1x128xf32, #tpu.memory_space<vmem>>, %arg15: memref<1x128xf32, #tpu.memory_space<vmem>>) attributes {dimension_semantics = [], scalar_prefetch = 0 : i64, scratch_operands = 1 : i64, tpu.core_type = #tpu.core_type<tc>} {
    %c0 = arith.constant 0 : index
    %c0_0 = arith.constant 0 : index
    %0 = vector.load %arg0[%c0, %c0_0] : memref<1x32xf32, #tpu.memory_space<vmem>>, vector<1x32xf32>
    %c0_1 = arith.constant 0 : index
    %c0_2 = arith.constant 0 : index
    %1 = vector.load %arg3[%c0_1, %c0_2] : memref<32x256xf32, #tpu.memory_space<vmem>>, vector<32x256xf32>
    %cst = arith.constant dense<0.000000e+00> : vector<1x256xf32>
    %2 = tpu.matmul %0, %1, %cst {dimension_numbers = #tpu.dot_dimension_numbers<[1], [0], [0], [1], [0, 0, 1, 1], [], []>} : vector<1x32xf32>, vector<32x256xf32>, vector<1x256xf32> -> vector<1x256xf32>
    %c0_3 = arith.constant 0 : index
    %c0_4 = arith.constant 0 : index
    %3 = vector.load %arg4[%c0_3, %c0_4] : memref<1x256xf32, #tpu.memory_space<vmem>>, vector<1x256xf32>
    %4 = arith.addf %2, %3 : vector<1x256xf32>
    %c0_5 = arith.constant 0 : index
    %c0_6 = arith.constant 0 : index
    %5 = vector.load %arg1[%c0_5, %c0_6] : memref<1x128xf32, #tpu.memory_space<vmem>>, vector<1x128xf32>
    %c0_7 = arith.constant 0 : index
    %c0_8 = arith.constant 0 : index
    %6 = vector.load %arg5[%c0_7, %c0_8] : memref<128x512xf32, #tpu.memory_space<vmem>>, vector<128x512xf32>
    %cst_9 = arith.constant dense<0.000000e+00> : vector<1x512xf32>
    %7 = tpu.matmul %5, %6, %cst_9 {dimension_numbers = #tpu.dot_dimension_numbers<[1], [0], [0], [1], [0, 0, 1, 1], [], []>} : vector<1x128xf32>, vector<128x512xf32>, vector<1x512xf32> -> vector<1x512xf32>
    %c0_10 = arith.constant 0 : index
    %c0_11 = arith.constant 0 : index
    %8 = vector.load %arg6[%c0_10, %c0_11] : memref<1x512xf32, #tpu.memory_space<vmem>>, vector<1x512xf32>
    %9 = arith.addf %7, %8 : vector<1x512xf32>
    %10 = vector.extract_strided_slice %4 {offsets = [0, 0], sizes = [1, 128], strides = [1, 1]} : vector<1x256xf32> to vector<1x128xf32>
    %11 = vector.extract_strided_slice %9 {offsets = [0, 0], sizes = [1, 128], strides = [1, 1]} : vector<1x512xf32> to vector<1x128xf32>
    %12 = arith.addf %10, %11 : vector<1x128xf32>
    %cst_12 = arith.constant dense<0xFF800000> : vector<1xf32>
    %13 = vector.multi_reduction <maximumf>, %12, %cst_12 [1] : vector<1x128xf32> to vector<1xf32>
    %14 = vector.shape_cast %13 : vector<1xf32> to vector<1x1xf32>
    %15 = vector.broadcast %14 : vector<1x1xf32> to vector<1x128xf32>
    %16 = arith.subf %12, %15 : vector<1x128xf32>
    %17 = math.exp %16 : vector<1x128xf32>
    %cst_13 = arith.constant dense<0.000000e+00> : vector<1xf32>
    %18 = vector.multi_reduction <add>, %17, %cst_13 [1] : vector<1x128xf32> to vector<1xf32>
    %19 = vector.shape_cast %18 : vector<1xf32> to vector<1x1xf32>
    %20 = vector.broadcast %19 : vector<1x1xf32> to vector<1x128xf32>
    %21 = arith.divf %17, %20 : vector<1x128xf32>
    %c0_14 = arith.constant 0 : index
    %c0_15 = arith.constant 0 : index
    %22 = vector.load %arg14[%c0_14, %c0_15] : memref<1x128xf32, #tpu.memory_space<vmem>>, vector<1x128xf32>
    tpu.vector_store %arg14[%c0_14, %c0_15], %21 {strides = array<i32>} : memref<1x128xf32, #tpu.memory_space<vmem>>, vector<1x128xf32>,
    %c0_16 = arith.constant 0 : index
    %c0_17 = arith.constant 0 : index
    %23 = vector.load %arg2[%c0_16, %c0_17] : memref<128x32xf32, #tpu.memory_space<vmem>>, vector<128x32xf32>
    %cst_18 = arith.constant dense<0.000000e+00> : vector<1x32xf32>
    %24 = tpu.matmul %21, %23, %cst_18 {dimension_numbers = #tpu.dot_dimension_numbers<[1], [0], [0], [1], [0, 0, 1, 1], [], []>} : vector<1x128xf32>, vector<128x32xf32>, vector<1x32xf32> -> vector<1x32xf32>
    %25 = vector.extract_strided_slice %4 {offsets = [0, 128], sizes = [1, 128], strides = [1, 1]} : vector<1x256xf32> to vector<1x128xf32>
    %c0_19 = arith.constant 0 : index
    %c0_20 = arith.constant 0 : index
    %26 = vector.load %arg7[%c0_19, %c0_20] : memref<32x128xf32, #tpu.memory_space<vmem>>, vector<32x128xf32>
    %cst_21 = arith.constant dense<0.000000e+00> : vector<1x128xf32>
    %27 = tpu.matmul %24, %26, %cst_21 {dimension_numbers = #tpu.dot_dimension_numbers<[1], [0], [0], [1], [0, 0, 1, 1], [], []>} : vector<1x32xf32>, vector<32x128xf32>, vector<1x128xf32> -> vector<1x128xf32>
    %28 = arith.addf %25, %27 : vector<1x128xf32>
    %cst_22 = arith.constant 0.000000e+00 : f32
    %29 = vector.broadcast %cst_22 : f32 to vector<1x128xf32>
    %30 = arith.maximumf %28, %29 : vector<1x128xf32>
    %c0_23 = arith.constant 0 : index
    %c0_24 = arith.constant 0 : index
    %31 = vector.load %arg8[%c0_23, %c0_24] : memref<128x384xf32, #tpu.memory_space<vmem>>, vector<128x384xf32>
    %cst_25 = arith.constant dense<0.000000e+00> : vector<1x384xf32>
    %32 = tpu.matmul %30, %31, %cst_25 {dimension_numbers = #tpu.dot_dimension_numbers<[1], [0], [0], [1], [0, 0, 1, 1], [], []>} : vector<1x128xf32>, vector<128x384xf32>, vector<1x384xf32> -> vector<1x384xf32>
    %c0_26 = arith.constant 0 : index
    %c0_27 = arith.constant 0 : index
    %33 = vector.load %arg9[%c0_26, %c0_27] : memref<1x384xf32, #tpu.memory_space<vmem>>, vector<1x384xf32>
    %34 = arith.addf %32, %33 : vector<1x384xf32>
    %35 = vector.extract_strided_slice %9 {offsets = [0, 128], sizes = [1, 384], strides = [1, 1]} : vector<1x512xf32> to vector<1x384xf32>
    %36 = vector.extract_strided_slice %34 {offsets = [0, 0], sizes = [1, 128], strides = [1, 1]} : vector<1x384xf32> to vector<1x128xf32>
    %37 = vector.extract_strided_slice %35 {offsets = [0, 0], sizes = [1, 128], strides = [1, 1]} : vector<1x384xf32> to vector<1x128xf32>
    %38 = arith.addf %36, %37 : vector<1x128xf32>
    %39 = arith.negf %38 : vector<1x128xf32>
    %40 = math.exp %39 : vector<1x128xf32>
    %cst_28 = arith.constant 1.000000e+00 : f32
    %41 = vector.broadcast %cst_28 : f32 to vector<1x128xf32>
    %42 = arith.addf %41, %40 : vector<1x128xf32>
    %43 = arith.divf %41, %42 : vector<1x128xf32>
    %44 = vector.extract_strided_slice %34 {offsets = [0, 128], sizes = [1, 128], strides = [1, 1]} : vector<1x384xf32> to vector<1x128xf32>
    %45 = vector.extract_strided_slice %35 {offsets = [0, 128], sizes = [1, 128], strides = [1, 1]} : vector<1x384xf32> to vector<1x128xf32>
    %46 = arith.addf %44, %45 : vector<1x128xf32>
    %47 = arith.negf %46 : vector<1x128xf32>
    %48 = math.exp %47 : vector<1x128xf32>
    %cst_29 = arith.constant 1.000000e+00 : f32
    %49 = vector.broadcast %cst_29 : f32 to vector<1x128xf32>
    %50 = arith.addf %49, %48 : vector<1x128xf32>
    %51 = arith.divf %49, %50 : vector<1x128xf32>
    %52 = vector.extract_strided_slice %34 {offsets = [0, 256], sizes = [1, 128], strides = [1, 1]} : vector<1x384xf32> to vector<1x128xf32>
    %53 = vector.extract_strided_slice %35 {offsets = [0, 256], sizes = [1, 128], strides = [1, 1]} : vector<1x384xf32> to vector<1x128xf32>
    %54 = arith.mulf %43, %53 : vector<1x128xf32>
    %55 = arith.addf %52, %54 : vector<1x128xf32>
    %56 = math.tanh %55 : vector<1x128xf32>
    %cst_30 = arith.constant 1.000000e+00 : f32
    %57 = vector.broadcast %cst_30 : f32 to vector<1x128xf32>
    %58 = arith.subf %57, %51 : vector<1x128xf32>
    %59 = arith.mulf %58, %56 : vector<1x128xf32>
    %60 = arith.mulf %51, %5 : vector<1x128xf32>
    %61 = arith.addf %59, %60 : vector<1x128xf32>
    %c0_31 = arith.constant 0 : index
    %c0_32 = arith.constant 0 : index
    %62 = vector.load %arg15[%c0_31, %c0_32] : memref<1x128xf32, #tpu.memory_space<vmem>>, vector<1x128xf32>
    tpu.vector_store %arg15[%c0_31, %c0_32], %61 {strides = array<i32>} : memref<1x128xf32, #tpu.memory_space<vmem>>, vector<1x128xf32>,
    %c0_33 = arith.constant 0 : index
    %c0_34 = arith.constant 0 : index
    %63 = vector.load %arg13[%c0_33, %c0_34] : memref<1x128xf32, #tpu.memory_space<vmem>>, vector<1x128xf32>
    tpu.vector_store %arg13[%c0_33, %c0_34], %61 {strides = array<i32>} : memref<1x128xf32, #tpu.memory_space<vmem>>, vector<1x128xf32>,
    %c0_35 = arith.constant 0 : index
    %c0_36 = arith.constant 0 : index
    %64 = vector.load %arg15[%c0_35, %c0_36] : memref<1x128xf32, #tpu.memory_space<vmem>>, vector<1x128xf32>
    %c0_37 = arith.constant 0 : index
    %c0_38 = arith.constant 0 : index
    %65 = vector.load %arg10[%c0_37, %c0_38] : memref<128x128xf32, #tpu.memory_space<vmem>>, vector<128x128xf32>
    %cst_39 = arith.constant dense<0.000000e+00> : vector<1x128xf32>
    %66 = tpu.matmul %64, %65, %cst_39 {dimension_numbers = #tpu.dot_dimension_numbers<[1], [0], [0], [1], [0, 0, 1, 1], [], []>} : vector<1x128xf32>, vector<128x128xf32>, vector<1x128xf32> -> vector<1x128xf32>
    %c0_40 = arith.constant 0 : index
    %c0_41 = arith.constant 0 : index
    %67 = vector.load %arg11[%c0_40, %c0_41] : memref<1x128xf32, #tpu.memory_space<vmem>>, vector<1x128xf32>
    %68 = arith.addf %66, %67 : vector<1x128xf32>
    %cst_42 = arith.constant dense<0xFF800000> : vector<1xf32>
    %69 = vector.multi_reduction <maximumf>, %68, %cst_42 [1] : vector<1x128xf32> to vector<1xf32>
    %70 = vector.shape_cast %69 : vector<1xf32> to vector<1x1xf32>
    %71 = vector.broadcast %70 : vector<1x1xf32> to vector<1x128xf32>
    %72 = arith.subf %68, %71 : vector<1x128xf32>
    %73 = math.exp %72 : vector<1x128xf32>
    %cst_43 = arith.constant dense<0.000000e+00> : vector<1xf32>
    %74 = vector.multi_reduction <add>, %73, %cst_43 [1] : vector<1x128xf32> to vector<1xf32>
    %75 = vector.shape_cast %74 : vector<1xf32> to vector<1x1xf32>
    %76 = math.log %75 : vector<1x1xf32>
    %77 = vector.broadcast %76 : vector<1x1xf32> to vector<1x128xf32>
    %78 = arith.subf %72, %77 : vector<1x128xf32>
    %c0_44 = arith.constant 0 : index
    %c0_45 = arith.constant 0 : index
    %79 = vector.load %arg12[%c0_44, %c0_45] : memref<1x128xf32, #tpu.memory_space<vmem>>, vector<1x128xf32>
    tpu.vector_store %arg12[%c0_44, %c0_45], %78 {strides = array<i32>} : memref<1x128xf32, #tpu.memory_space<vmem>>, vector<1x128xf32>,
    return
  }
}

</mosaic_0001>

<llo_original>
// kernel: atten_decoder_decode.1
$region0: #{atten_decoder_decode.1}
  #allocation0 [shape = 'u32[]', space=smem, size = 0x4, offset = 0x4, fixed_abs, tag = 'smem constant byte address 0x4 - core index']
  #allocation1 [shape = 'u32[144,128]{1,0:T(1,128)}', space=vmem, size = 0x12000, scoped, tag = 'internal scratch']
  #allocation2 [shape = 'f32[1,128]{1,0:T(1,128)}', space=vmem, size = 0x200, scoped, tag = 'scratch operand']
  %s0 = inlined_call_operand.vmem [shape: f32[1,32], index: 0, kind: input, shape index: {}]
  %s1 = inlined_call_operand.vmem [shape: f32[1,128], index: 1, kind: input, shape index: {}]
  %s2 = inlined_call_operand.vmem [shape: f32[128,32], index: 2, kind: input, shape index: {}]
  %s3 = inlined_call_operand.vmem [shape: f32[32,256], index: 3, kind: input, shape index: {}]
  %s4 = inlined_call_operand.vmem [shape: f32[1,256], index: 4, kind: input, shape index: {}]
  %s5 = inlined_call_operand.vmem [shape: f32[128,512], index: 5, kind: input, shape index: {}]
  %s6 = inlined_call_operand.vmem [shape: f32[1,512], index: 6, kind: input, shape index: {}]
  %s7 = inlined_call_operand.vmem [shape: f32[32,128], index: 7, kind: input, shape index: {}]
  %s8 = inlined_call_operand.vmem [shape: f32[128,384], index: 8, kind: input, shape index: {}]
  %s9 = inlined_call_operand.vmem [shape: f32[1,384], index: 9, kind: input, shape index: {}]
  %s10 = inlined_call_operand.vmem [shape: f32[128,128], index: 10, kind: input, shape index: {}]
  %s11 = inlined_call_operand.vmem [shape: f32[1,128], index: 11, kind: input, shape index: {}]
  %s12 = inlined_call_operand.hbm [shape: f32[1,128], index: 12, kind: output, shape index: {0}]
  %s13 = inlined_call_operand.vmem [shape: f32[1,128], index: 13, kind: output, shape index: {1}]
  %s14 = inlined_call_operand.hbm [shape: f32[1,128], index: 14, kind: output, shape index: {2}]
  %15 = xla_tuple %s12, %s13, %s14
  %s16 = sld [smem:[#allocation0]]
  $region74: #{atten_decoder_decode.1} parent=0
    _
  %s18 = ssub.s32 1, %s16
  %s19 = scalar_select 0, %s18, %s16
  $region1: #{atten_decoder_decode.1} parent=0
    #allocation3 [shape = 'u8[512]{0}', space=vmem, size = 0x400, scoped, tag = 'output window, operand 0, single buffered']
    #allocation4 [shape = 's32[1]{0}', space=sflag, size = 0x4, scoped, tag = 'scoped memory for atten_decoder_decode.1']
    #allocation5 [shape = 'u8[512]{0}', space=vmem, size = 0x400, scoped, tag = 'output window, operand 2, single buffered']
    #allocation6 [shape = 's32[1]{0}', space=sflag, size = 0x4, scoped, tag = 'scoped memory for atten_decoder_decode.1']
    %20 = vsyncpa [#allocation4], 0
    %21 = vsyncpa [#allocation6], 0
    // Predicated region
    $region2: #{atten_decoder_decode.1} parent=1 // pred_check
      _
    $region3: #{atten_decoder_decode.1} parent=1 // pred_check_branch
      %23 = sbr.rel (0) target = $region5
    $region4: #{atten_decoder_decode.1} parent=1 // pred_region
      _
    $region5: #{atten_decoder_decode.1} parent=1 // pred_fallthru
      _
    // Predicated region
    $region6: #{atten_decoder_decode.1} parent=1 // pred_check
      _
    $region7: #{atten_decoder_decode.1} parent=1 // pred_check_branch
      %25 = sbr.rel (0) target = $region9
    $region8: #{atten_decoder_decode.1} parent=1 // pred_region
      _
    $region9: #{atten_decoder_decode.1} parent=1 // pred_fallthru
      _
    // Predicated region
    $region10: #{atten_decoder_decode.1} parent=1 // pred_check
      _
    $region11: #{atten_decoder_decode.1} parent=1 // pred_check_branch
      %27 = sbr.rel (0) target = $region13
    $region12: #{atten_decoder_decode.1} parent=1 // pred_region
      _
    $region13: #{atten_decoder_decode.1} parent=1 // pred_fallthru
      _
    // Predicated region
    $region14: #{atten_decoder_decode.1} parent=1 // pred_check
      _
    $region15: #{atten_decoder_decode.1} parent=1 // pred_check_branch
      %29 = sbr.rel (0) target = $region17
    $region16: #{atten_decoder_decode.1} parent=1 // pred_region
      _
    $region17: #{atten_decoder_decode.1} parent=1 // pred_fallthru
      _
    // Predicated region
    $region18: #{atten_decoder_decode.1} parent=1 // pred_check
      _
    $region19: #{atten_decoder_decode.1} parent=1 // pred_check_branch
      %31 = sbr.rel (0) target = $region21
    $region20: #{atten_decoder_decode.1} parent=1 // pred_region
      _
    $region21: #{atten_decoder_decode.1} parent=1 // pred_fallthru
      _
    // Predicated region
    $region22: #{atten_decoder_decode.1} parent=1 // pred_check
      _
    $region23: #{atten_decoder_decode.1} parent=1 // pred_check_branch
      %33 = sbr.rel (0) target = $region25
    $region24: #{atten_decoder_decode.1} parent=1 // pred_region
      _
    $region25: #{atten_decoder_decode.1} parent=1 // pred_fallthru
      _
    // Predicated region
    $region26: #{atten_decoder_decode.1} parent=1 // pred_check
      _
    $region27: #{atten_decoder_decode.1} parent=1 // pred_check_branch
      %35 = sbr.rel (0) target = $region29
    $region28: #{atten_decoder_decode.1} parent=1 // pred_region
      _
    $region29: #{atten_decoder_decode.1} parent=1 // pred_fallthru
      _
    // Predicated region
    $region30: #{atten_decoder_decode.1} parent=1 // pred_check
      _
    $region31: #{atten_decoder_decode.1} parent=1 // pred_check_branch
      %37 = sbr.rel (0) target = $region33
    $region32: #{atten_decoder_decode.1} parent=1 // pred_region
      _
    $region33: #{atten_decoder_decode.1} parent=1 // pred_fallthru
      _
    // Predicated region
    $region34: #{atten_decoder_decode.1} parent=1 // pred_check
      _
    $region35: #{atten_decoder_decode.1} parent=1 // pred_check_branch
      %39 = sbr.rel (0) target = $region37
    $region36: #{atten_decoder_decode.1} parent=1 // pred_region
      _
    $region37: #{atten_decoder_decode.1} parent=1 // pred_fallthru
      _
    // Predicated region
    $region38: #{atten_decoder_decode.1} parent=1 // pred_check
      _
    $region39: #{atten_decoder_decode.1} parent=1 // pred_check_branch
      %41 = sbr.rel (0) target = $region41
    $region40: #{atten_decoder_decode.1} parent=1 // pred_region
      _
    $region41: #{atten_decoder_decode.1} parent=1 // pred_fallthru
      _
    // Predicated region
    $region42: #{atten_decoder_decode.1} parent=1 // pred_check
      _
    $region43: #{atten_decoder_decode.1} parent=1 // pred_check_branch
      %43 = sbr.rel (0) target = $region45
    $region44: #{atten_decoder_decode.1} parent=1 // pred_region
      _
    $region45: #{atten_decoder_decode.1} parent=1 // pred_fallthru
      _
    // Predicated region
    $region46: #{atten_decoder_decode.1} parent=1 // pred_check
      _
    $region47: #{atten_decoder_decode.1} parent=1 // pred_check_branch
      %45 = sbr.rel (0) target = $region49
    $region48: #{atten_decoder_decode.1} parent=1 // pred_region
      _
    $region49: #{atten_decoder_decode.1} parent=1 // pred_fallthru
      _
    %v46 = vld [vmem:[%s0] sm:$0x1]
    %v47 = vld [vmem:[%s3] sm:$0xff]
    %v48 = vld [vmem:[%s3 + $0x8] sm:$0xff]
    %v49 = vld [vmem:[%s3 + $0x10] sm:$0xff]
    %v50 = vld [vmem:[%s3 + $0x18] sm:$0xff]
    %v51 = vld [vmem:[%s3 + $0x20] sm:$0xff]
    %v52 = vld [vmem:[%s3 + $0x28] sm:$0xff]
    %v53 = vld [vmem:[%s3 + $0x30] sm:$0xff]
    %v54 = vld [vmem:[%s3 + $0x38] sm:$0xff]
    %v55 = vld [vmem:[%s4] sm:$0x3]
    %v57 = vlaneseq
    %v58 = vshrl.u32 %v57, 7
    %v59 = vsub.s32 0, %v58
    %v60 = vrot.slane %v55, %v59
    %v61 = vlaneseq
    %v62 = vshrl.u32 %v61, 7
    %v63 = vsub.s32 1, %v62
    %v64 = vrot.slane %v55, %v63
    %vm67 = vcmask 261120
    %v69 = vsel %vm67, %v46, 0
    %71 = vmatprep.subr.mxu0 %v48
    %72 = vmatpush1.msra.mxu0 %v47
    %73 = vmatprep.subr.mxu0 %v50
    %74 = vmatpush1.msra.mxu0 %v49
    %75 = vmatprep.subr.mxu0 %v52
    %76 = vmatpush1.msra.mxu0 %v51
    %77 = vmatprep.subr.mxu0 %v54
    %78 = vmatpush1.msra.mxu0 %v53
    %79 = vmatprep.subr.mxu0 0.0
    %80 = vmatpush1.msra.mxu0 0.0
    %81 = vmatprep.subr.mxu0 0.0
    %82 = vmatpush1.msra.mxu0 0.0
    %83 = vmatprep.subr.mxu0 0.0
    %84 = vmatpush1.msra.mxu0 0.0
    %85 = vmatprep.subr.mxu0 0.0
    %86 = vmatpush1.msra.mxu0 0.0
    %87 = vmatprep.subr.mxu0 0.0
    %88 = vmatpush1.msra.mxu0 0.0
    %89 = vmatprep.subr.mxu0 0.0
    %90 = vmatpush1.msra.mxu0 0.0
    %91 = vmatprep.subr.mxu0 0.0
    %92 = vmatpush1.msra.mxu0 0.0
    %93 = vmatprep.subr.mxu0 0.0
    %94 = vmatpush1.msra.mxu0 0.0
    %95 = vmatprep.subr.mxu0 0.0
    %96 = vmatpush1.msra.mxu0 0.0
    %97 = vmatprep.subr.mxu0 0.0
    %98 = vmatpush1.msra.mxu0 0.0
    %99 = vmatprep.subr.mxu0 0.0
    %100 = vmatpush1.msra.mxu0 0.0
    %101 = vmatprep.subr.mxu0 0.0
    %102 = vmatpush1.msra.mxu0 0.0
    %103 = vmatprep.subr.mxu0 0.0
    %104 = vmatpush1.msra.mxu0 0.0
    %105 = vmatprep.subr.mxu0 0.0
    %106 = vmatpush1.msra.mxu0 0.0
    %107 = vmatprep.subr.mxu0 0.0
    %108 = vmatpush1.msra.mxu0 0.0
    %109 = vmatprep.subr.mxu0 0.0
    %110 = vmatpush1.msra.mxu0 0.0
    %111 = vmatprep.subr.mxu0 0.0
    %112 = vmatpush1.msra.mxu0 0.0
    %113 = vmatprep.subr.mxu0 0.0
    %114 = vmatpush1.msra.mxu0 0.0
    %115 = vmatprep.subr.mxu0 0.0
    %116 = vmatpush1.msra.mxu0 0.0
    %117 = vmatprep.subr.mxu0 0.0
    %118 = vmatpush1.msra.mxu0 0.0
    %119 = vmatprep.subr.mxu0 0.0
    %120 = vmatpush1.msra.mxu0 0.0
    %121 = vmatprep.subr.mxu0 0.0
    %122 = vmatpush1.msra.mxu0 0.0
    %123 = vmatprep.subr.mxu0 0.0
    %124 = vmatpush1.msra.mxu0 0.0
    %125 = vmatprep.subr.mxu0 0.0
    %126 = vmatpush1.msra.mxu0 0.0
    %127 = vmatprep.subr.mxu0 0.0
    %128 = vmatpush1.msra.mxu0 0.0
    %129 = vmatprep.subr.mxu0 0.0
    %130 = vmatpush1.msra.mxu0 0.0
    %131 = vmatprep.subr.mxu0 0.0
    %132 = vmatpush1.msra.mxu0 0.0
    %133 = vmatprep.subr.mxu0 0.0
    %134 = vmatpush1.msra.mxu0 0.0
    %135 = vmatprep.mubr.f32.mxu0 0.0
    %136 = vmatmul.mubr.f32.gmra.mrb[0].mxu0 %v69
    %v137 = vpop.f32.mrb[0].mxu0
    %v138 = vadd.f32 %v60, %v137
    %v139 = vpop.f32.mrb[0].mxu0
    %v140 = vadd.f32 %v64, %v139
    %141 = vdwg.mxu0
    %v142 = vld [vmem:[%s1] sm:$0x1]
    %v143 = vld [vmem:[%s5] sm:$0xff]
    %v144 = vld [vmem:[%s5 + $0x8] sm:$0xff]
    %v145 = vld [vmem:[%s5 + $0x10] sm:$0xff]
    %v146 = vld [vmem:[%s5 + $0x18] sm:$0xff]
    %v147 = vld [vmem:[%s5 + $0x20] sm:$0xff]
    %v148 = vld [vmem:[%s5 + $0x28] sm:$0xff]
    %v149 = vld [vmem:[%s5 + $0x30] sm:$0xff]
    %v150 = vld [vmem:[%s5 + $0x38] sm:$0xff]
    %v151 = vld [vmem:[%s5 + $0x40] sm:$0xff]
    %v152 = vld [vmem:[%s5 + $0x48] sm:$0xff]
    %v153 = vld [vmem:[%s5 + $0x50] sm:$0xff]
    %v154 = vld [vmem:[%s5 + $0x58] sm:$0xff]
    %v155 = vld [vmem:[%s5 + $0x60] sm:$0xff]
    %v156 = vld [vmem:[%s5 + $0x68] sm:$0xff]
    %v157 = vld [vmem:[%s5 + $0x70] sm:$0xff]
    %v158 = vld [vmem:[%s5 + $0x78] sm:$0xff]
    %v159 = vld [vmem:[%s5 + $0x80] sm:$0xff]
    %v160 = vld [vmem:[%s5 + $0x88] sm:$0xff]
    %v161 = vld [vmem:[%s5 + $0x90] sm:$0xff]
    %v162 = vld [vmem:[%s5 + $0x98] sm:$0xff]
    %v163 = vld [vmem:[%s5 + $0xa0] sm:$0xff]
    %v164 = vld [vmem:[%s5 + $0xa8] sm:$0xff]
    %v165 = vld [vmem:[%s5 + $0xb0] sm:$0xff]
    %v166 = vld [vmem:[%s5 + $0xb8] sm:$0xff]
    %v167 = vld [vmem:[%s5 + $0xc0] sm:$0xff]
    %v168 = vld [vmem:[%s5 + $0xc8] sm:$0xff]
    %v169 = vld [vmem:[%s5 + $0xd0] sm:$0xff]
    %v170 = vld [vmem:[%s5 + $0xd8] sm:$0xff]
    %v171 = vld [vmem:[%s5 + $0xe0] sm:$0xff]
    %v172 = vld [vmem:[%s5 + $0xe8] sm:$0xff]
    %v173 = vld [vmem:[%s5 + $0xf0] sm:$0xff]
    %v174 = vld [vmem:[%s5 + $0xf8] sm:$0xff]
    %v175 = vld [vmem:[%s5 + $0x100] sm:$0xff]
    %v176 = vld [vmem:[%s5 + $0x108] sm:$0xff]
    %v177 = vld [vmem:[%s5 + $0x110] sm:$0xff]
    %v178 = vld [vmem:[%s5 + $0x118] sm:$0xff]
    %v179 = vld [vmem:[%s5 + $0x120] sm:$0xff]
    %v180 = vld [vmem:[%s5 + $0x128] sm:$0xff]
    %v181 = vld [vmem:[%s5 + $0x130] sm:$0xff]
    %v182 = vld [vmem:[%s5 + $0x138] sm:$0xff]
    %v183 = vld [vmem:[%s5 + $0x140] sm:$0xff]
    %v184 = vld [vmem:[%s5 + $0x148] sm:$0xff]
    %v185 = vld [vmem:[%s5 + $0x150] sm:$0xff]
    %v186 = vld [vmem:[%s5 + $0x158] sm:$0xff]
    %v187 = vld [vmem:[%s5 + $0x160] sm:$0xff]
    %v188 = vld [vmem:[%s5 + $0x168] sm:$0xff]
    %v189 = vld [vmem:[%s5 + $0x170] sm:$0xff]
    %v190 = vld [vmem:[%s5 + $0x178] sm:$0xff]
    %v191 = vld [vmem:[%s5 + $0x180] sm:$0xff]
    %v192 = vld [vmem:[%s5 + $0x188] sm:$0xff]
    %v193 = vld [vmem:[%s5 + $0x190] sm:$0xff]
    %v194 = vld [vmem:[%s5 + $0x198] sm:$0xff]
    %v195 = vld [vmem:[%s5 + $0x1a0] sm:$0xff]
    %v196 = vld [vmem:[%s5 + $0x1a8] sm:$0xff]
    %v197 = vld [vmem:[%s5 + $0x1b0] sm:$0xff]
    %v198 = vld [vmem:[%s5 + $0x1b8] sm:$0xff]
    %v199 = vld [vmem:[%s5 + $0x1c0] sm:$0xff]
    %v200 = vld [vmem:[%s5 + $0x1c8] sm:$0xff]
    %v201 = vld [vmem:[%s5 + $0x1d0] sm:$0xff]
    %v202 = vld [vmem:[%s5 + $0x1d8] sm:$0xff]
    %v203 = vld [vmem:[%s5 + $0x1e0] sm:$0xff]
    %v204 = vld [vmem:[%s5 + $0x1e8] sm:$0xff]
    %v205 = vld [vmem:[%s5 + $0x1f0] sm:$0xff]
    %v206 = vld [vmem:[%s5 + $0x1f8] sm:$0xff]
    %v207 = vld [vmem:[%s6] sm:$0xf]
    %v209 = vlaneseq
    %v210 = vshrl.u32 %v209, 7
    %v211 = vsub.s32 0, %v210
    %v212 = vrot.slane %v207, %v211
    %v213 = vlaneseq
    %v214 = vshrl.u32 %v213, 7
    %v215 = vsub.s32 1, %v214
    %v216 = vrot.slane %v207, %v215
    %v217 = vlaneseq
    %v218 = vshrl.u32 %v217, 7
    %v219 = vsub.s32 2, %v218
    %v220 = vrot.slane %v207, %v219
    %v221 = vlaneseq
    %v222 = vshrl.u32 %v221, 7
    %v223 = vsub.s32 3, %v222
    %v224 = vrot.slane %v207, %v223
    %229 = vmatprep.subr.mxu0 %v144
    %230 = vmatpush1.msra.mxu0 %v143
    %231 = vmatprep.subr.mxu0 %v148
    %232 = vmatpush1.msra.mxu0 %v147
    %233 = vmatprep.subr.mxu0 %v152
    %234 = vmatpush1.msra.mxu0 %v151
    %235 = vmatprep.subr.mxu0 %v156
    %236 = vmatpush1.msra.mxu0 %v155
    %237 = vmatprep.subr.mxu0 %v160
    %238 = vmatpush1.msra.mxu0 %v159
    %239 = vmatprep.subr.mxu0 %v164
    %240 = vmatpush1.msra.mxu0 %v163
    %241 = vmatprep.subr.mxu0 %v168
    %242 = vmatpush1.msra.mxu0 %v167
    %243 = vmatprep.subr.mxu0 %v172
    %244 = vmatpush1.msra.mxu0 %v171
    %245 = vmatprep.subr.mxu0 %v176
    %246 = vmatpush1.msra.mxu0 %v175
    %247 = vmatprep.subr.mxu0 %v180
    %248 = vmatpush1.msra.mxu0 %v179
    %249 = vmatprep.subr.mxu0 %v184
    %250 = vmatpush1.msra.mxu0 %v183
    %251 = vmatprep.subr.mxu0 %v188
    %252 = vmatpush1.msra.mxu0 %v187
    %253 = vmatprep.subr.mxu0 %v192
    %254 = vmatpush1.msra.mxu0 %v191
    %255 = vmatprep.subr.mxu0 %v196
    %256 = vmatpush1.msra.mxu0 %v195
    %257 = vmatprep.subr.mxu0 %v200
    %258 = vmatpush1.msra.mxu0 %v199
    %259 = vmatprep.subr.mxu0 %v204
    %260 = vmatpush1.msra.mxu0 %v203
    %261 = vmatprep.subr.mxu0 0.0
    %262 = vmatpush1.msra.mxu0 0.0
    %263 = vmatprep.subr.mxu0 0.0
    %264 = vmatpush1.msra.mxu0 0.0
    %265 = vmatprep.subr.mxu0 0.0
    %266 = vmatpush1.msra.mxu0 0.0
    %267 = vmatprep.subr.mxu0 0.0
    %268 = vmatpush1.msra.mxu0 0.0
    %269 = vmatprep.subr.mxu0 0.0
    %270 = vmatpush1.msra.mxu0 0.0
    %271 = vmatprep.subr.mxu0 0.0
    %272 = vmatpush1.msra.mxu0 0.0
    %273 = vmatprep.subr.mxu0 0.0
    %274 = vmatpush1.msra.mxu0 0.0
    %275 = vmatprep.subr.mxu0 0.0
    %276 = vmatpush1.msra.mxu0 0.0
    %277 = vmatprep.subr.mxu0 0.0
    %278 = vmatpush1.msra.mxu0 0.0
    %279 = vmatprep.subr.mxu0 0.0
    %280 = vmatpush1.msra.mxu0 0.0
    %281 = vmatprep.subr.mxu0 0.0
    %282 = vmatpush1.msra.mxu0 0.0
    %283 = vmatprep.subr.mxu0 0.0
    %284 = vmatpush1.msra.mxu0 0.0
    %285 = vmatprep.subr.mxu0 0.0
    %286 = vmatpush1.msra.mxu0 0.0
    %287 = vmatprep.subr.mxu0 0.0
    %288 = vmatpush1.msra.mxu0 0.0
    %289 = vmatprep.subr.mxu0 0.0
    %290 = vmatpush1.msra.mxu0 0.0
    %291 = vmatprep.subr.mxu0 0.0
    %292 = vmatpush1.msra.mxu0 0.0
    %293 = vmatprep.mubr.f32.mxu0 0.0
    %294 = vmatmul.mubr.f32.gmra.mrb[0].mxu0 %v142
    %v295 = vpop.f32.mrb[0].mxu0
    %v296 = vadd.f32 %v212, %v295
    %v297 = vpop.f32.mrb[0].mxu0
    %v298 = vadd.f32 %v216, %v297
    %299 = vdwg.mxu0
    %300 = vmatprep.subr.mxu0 %v146
    %301 = vmatpush1.msra.mxu0 %v145
    %302 = vmatprep.subr.mxu0 %v150
    %303 = vmatpush1.msra.mxu0 %v149
    %304 = vmatprep.subr.mxu0 %v154
    %305 = vmatpush1.msra.mxu0 %v153
    %306 = vmatprep.subr.mxu0 %v158
    %307 = vmatpush1.msra.mxu0 %v157
    %308 = vmatprep.subr.mxu0 %v162
    %309 = vmatpush1.msra.mxu0 %v161
    %310 = vmatprep.subr.mxu0 %v166
    %311 = vmatpush1.msra.mxu0 %v165
    %312 = vmatprep.subr.mxu0 %v170
    %313 = vmatpush1.msra.mxu0 %v169
    %314 = vmatprep.subr.mxu0 %v174
    %315 = vmatpush1.msra.mxu0 %v173
    %316 = vmatprep.subr.mxu0 %v178
    %317 = vmatpush1.msra.mxu0 %v177
    %318 = vmatprep.subr.mxu0 %v182
    %319 = vmatpush1.msra.mxu0 %v181
    %320 = vmatprep.subr.mxu0 %v186
    %321 = vmatpush1.msra.mxu0 %v185
    %322 = vmatprep.subr.mxu0 %v190
    %323 = vmatpush1.msra.mxu0 %v189
    %324 = vmatprep.subr.mxu0 %v194
    %325 = vmatpush1.msra.mxu0 %v193
    %326 = vmatprep.subr.mxu0 %v198
    %327 = vmatpush1.msra.mxu0 %v197
    %328 = vmatprep.subr.mxu0 %v202
    %329 = vmatpush1.msra.mxu0 %v201
    %330 = vmatprep.subr.mxu0 %v206
    %331 = vmatpush1.msra.mxu0 %v205
    %332 = vmatprep.subr.mxu0 0.0
    %333 = vmatpush1.msra.mxu0 0.0
    %334 = vmatprep.subr.mxu0 0.0
    %335 = vmatpush1.msra.mxu0 0.0
    %336 = vmatprep.subr.mxu0 0.0
    %337 = vmatpush1.msra.mxu0 0.0
    %338 = vmatprep.subr.mxu0 0.0
    %339 = vmatpush1.msra.mxu0 0.0
    %340 = vmatprep.subr.mxu0 0.0
    %341 = vmatpush1.msra.mxu0 0.0
    %342 = vmatprep.subr.mxu0 0.0
    %343 = vmatpush1.msra.mxu0 0.0
    %344 = vmatprep.subr.mxu0 0.0
    %345 = vmatpush1.msra.mxu0 0.0
    %346 = vmatprep.subr.mxu0 0.0
    %347 = vmatpush1.msra.mxu0 0.0
    %348 = vmatprep.subr.mxu0 0.0
    %349 = vmatpush1.msra.mxu0 0.0
    %350 = vmatprep.subr.mxu0 0.0
    %351 = vmatpush1.msra.mxu0 0.0
    %352 = vmatprep.subr.mxu0 0.0
    %353 = vmatpush1.msra.mxu0 0.0
    %354 = vmatprep.subr.mxu0 0.0
    %355 = vmatpush1.msra.mxu0 0.0
    %356 = vmatprep.subr.mxu0 0.0
    %357 = vmatpush1.msra.mxu0 0.0
    %358 = vmatprep.subr.mxu0 0.0
    %359 = vmatpush1.msra.mxu0 0.0
    %360 = vmatprep.subr.mxu0 0.0
    %361 = vmatpush1.msra.mxu0 0.0
    %362 = vmatprep.subr.mxu0 0.0
    %363 = vmatpush1.msra.mxu0 0.0
    %364 = vmatprep.mubr.f32.mxu0 0.0
    %365 = vmatmul.mubr.f32.gmra.mrb[0].mxu0 %v142
    %v366 = vpop.f32.mrb[0].mxu0
    %v367 = vadd.f32 %v220, %v366
    %v368 = vpop.f32.mrb[0].mxu0
    %v369 = vadd.f32 %v224, %v368
    %370 = vdwg.mxu0
    %v371 = vadd.f32 %v138, %v296
    %vm372 = vcmask 1040384
    %v373 = vsel %vm372, %v371, -inf
    %374 = vmax.xlane.f32.xlu0 %v373
    %v375 = vpop.xlane.xlu0 %374
    %v376 = vsub.f32 %v371, %v375
    %v377 = vmul.f32 %v376, 1.442695
    %v378 = vpow.pop %v377
    %v379 = vsel %vm372, %v378, 0.0
    %380 = vadd.xlane.f32.xlu0 %v379
    %v381 = vpop.xlane.xlu0 %380
    %v382 = vrcp.pop %v381
    %v383 = vmul.f32 %v378, %v382
    %384 = vst [vmem:[#allocation5] sm:$0x1] %v383
    %v385 = vld [vmem:[%s2] sm:$0xff]
    %v386 = vld [vmem:[%s2 + $0x8] sm:$0xff]
    %v387 = vld [vmem:[%s2 + $0x10] sm:$0xff]
    %v388 = vld [vmem:[%s2 + $0x18] sm:$0xff]
    %v389 = vld [vmem:[%s2 + $0x20] sm:$0xff]
    %v390 = vld [vmem:[%s2 + $0x28] sm:$0xff]
    %v391 = vld [vmem:[%s2 + $0x30] sm:$0xff]
    %v392 = vld [vmem:[%s2 + $0x38] sm:$0xff]
    %v393 = vld [vmem:[%s2 + $0x40] sm:$0xff]
    %v394 = vld [vmem:[%s2 + $0x48] sm:$0xff]
    %v395 = vld [vmem:[%s2 + $0x50] sm:$0xff]
    %v396 = vld [vmem:[%s2 + $0x58] sm:$0xff]
    %v397 = vld [vmem:[%s2 + $0x60] sm:$0xff]
    %v398 = vld [vmem:[%s2 + $0x68] sm:$0xff]
    %v399 = vld [vmem:[%s2 + $0x70] sm:$0xff]
    %v400 = vld [vmem:[%s2 + $0x78] sm:$0xff]
    %401 = vmatprep.subr.mxu0 0.0
    %402 = vmatpush1.msra.mxu0 %v385
    %403 = vmatprep.subr.mxu0 0.0
    %404 = vmatpush1.msra.mxu0 %v386
    %405 = vmatprep.subr.mxu0 0.0
    %406 = vmatpush1.msra.mxu0 %v387
    %407 = vmatprep.subr.mxu0 0.0
    %408 = vmatpush1.msra.mxu0 %v388
    %409 = vmatprep.subr.mxu0 0.0
    %410 = vmatpush1.msra.mxu0 %v389
    %411 = vmatprep.subr.mxu0 0.0
    %412 = vmatpush1.msra.mxu0 %v390
    %413 = vmatprep.subr.mxu0 0.0
    %414 = vmatpush1.msra.mxu0 %v391
    %415 = vmatprep.subr.mxu0 0.0
    %416 = vmatpush1.msra.mxu0 %v392
    %417 = vmatprep.subr.mxu0 0.0
    %418 = vmatpush1.msra.mxu0 %v393
    %419 = vmatprep.subr.mxu0 0.0
    %420 = vmatpush1.msra.mxu0 %v394
    %421 = vmatprep.subr.mxu0 0.0
    %422 = vmatpush1.msra.mxu0 %v395
    %423 = vmatprep.subr.mxu0 0.0
    %424 = vmatpush1.msra.mxu0 %v396
    %425 = vmatprep.subr.mxu0 0.0
    %426 = vmatpush1.msra.mxu0 %v397
    %427 = vmatprep.subr.mxu0 0.0
    %428 = vmatpush1.msra.mxu0 %v398
    %429 = vmatprep.subr.mxu0 0.0
    %430 = vmatpush1.msra.mxu0 %v399
    %431 = vmatprep.subr.mxu0 0.0
    %432 = vmatpush1.msra.mxu0 %v400
    %433 = vmatprep.subr.mxu0 0.0
    %434 = vmatpush1.msra.mxu0 0.0
    %435 = vmatprep.subr.mxu0 0.0
    %436 = vmatpush1.msra.mxu0 0.0
    %437 = vmatprep.subr.mxu0 0.0
    %438 = vmatpush1.msra.mxu0 0.0
    %439 = vmatprep.subr.mxu0 0.0
    %440 = vmatpush1.msra.mxu0 0.0
    %441 = vmatprep.subr.mxu0 0.0
    %442 = vmatpush1.msra.mxu0 0.0
    %443 = vmatprep.subr.mxu0 0.0
    %444 = vmatpush1.msra.mxu0 0.0
    %445 = vmatprep.subr.mxu0 0.0
    %446 = vmatpush1.msra.mxu0 0.0
    %447 = vmatprep.subr.mxu0 0.0
    %448 = vmatpush1.msra.mxu0 0.0
    %449 = vmatprep.subr.mxu0 0.0
    %450 = vmatpush1.msra.mxu0 0.0
    %451 = vmatprep.subr.mxu0 0.0
    %452 = vmatpush1.msra.mxu0 0.0
    %453 = vmatprep.subr.mxu0 0.0
    %454 = vmatpush1.msra.mxu0 0.0
    %455 = vmatprep.subr.mxu0 0.0
    %456 = vmatpush1.msra.mxu0 0.0
    %457 = vmatprep.subr.mxu0 0.0
    %458 = vmatpush1.msra.mxu0 0.0
    %459 = vmatprep.subr.mxu0 0.0
    %460 = vmatpush1.msra.mxu0 0.0
    %461 = vmatprep.subr.mxu0 0.0
    %462 = vmatpush1.msra.mxu0 0.0
    %463 = vmatprep.subr.mxu0 0.0
    %464 = vmatpush1.msra.mxu0 0.0
    %465 = vmatprep.mubr.f32.mxu0 0.0
    %466 = vmatmul.mubr.f32.gmra.mrb[0].mxu0 %v383
    %v467 = vpop.f32.mrb[0].mxu0
    %v468 = vadd.f32 0.0, %v467
    %v469 = vpop.f32.mrb[0].mxu0
    %470 = vdwg.mxu0
    %v471 = vld [vmem:[%s7] sm:$0xff]
    %v472 = vld [vmem:[%s7 + $0x8] sm:$0xff]
    %v473 = vld [vmem:[%s7 + $0x10] sm:$0xff]
    %v474 = vld [vmem:[%s7 + $0x18] sm:$0xff]
    %v476 = vsel %vm67, %v468, 0
    %478 = vmatprep.subr.mxu0 0.0
    %479 = vmatpush1.msra.mxu0 %v471
    %480 = vmatprep.subr.mxu0 0.0
    %481 = vmatpush1.msra.mxu0 %v472
    %482 = vmatprep.subr.mxu0 0.0
    %483 = vmatpush1.msra.mxu0 %v473
    %484 = vmatprep.subr.mxu0 0.0
    %485 = vmatpush1.msra.mxu0 %v474
    %486 = vmatprep.subr.mxu0 0.0
    %487 = vmatpush1.msra.mxu0 0.0
    %488 = vmatprep.subr.mxu0 0.0
    %489 = vmatpush1.msra.mxu0 0.0
    %490 = vmatprep.subr.mxu0 0.0
    %491 = vmatpush1.msra.mxu0 0.0
    %492 = vmatprep.subr.mxu0 0.0
    %493 = vmatpush1.msra.mxu0 0.0
    %494 = vmatprep.subr.mxu0 0.0
    %495 = vmatpush1.msra.mxu0 0.0
    %496 = vmatprep.subr.mxu0 0.0
    %497 = vmatpush1.msra.mxu0 0.0
    %498 = vmatprep.subr.mxu0 0.0
    %499 = vmatpush1.msra.mxu0 0.0
    %500 = vmatprep.subr.mxu0 0.0
    %501 = vmatpush1.msra.mxu0 0.0
    %502 = vmatprep.subr.mxu0 0.0
    %503 = vmatpush1.msra.mxu0 0.0
    %504 = vmatprep.subr.mxu0 0.0
    %505 = vmatpush1.msra.mxu0 0.0
    %506 = vmatprep.subr.mxu0 0.0
    %507 = vmatpush1.msra.mxu0 0.0
    %508 = vmatprep.subr.mxu0 0.0
    %509 = vmatpush1.msra.mxu0 0.0
    %510 = vmatprep.subr.mxu0 0.0
    %511 = vmatpush1.msra.mxu0 0.0
    %512 = vmatprep.subr.mxu0 0.0
    %513 = vmatpush1.msra.mxu0 0.0
    %514 = vmatprep.subr.mxu0 0.0
    %515 = vmatpush1.msra.mxu0 0.0
    %516 = vmatprep.subr.mxu0 0.0
    %517 = vmatpush1.msra.mxu0 0.0
    %518 = vmatprep.subr.mxu0 0.0
    %519 = vmatpush1.msra.mxu0 0.0
    %520 = vmatprep.subr.mxu0 0.0
    %521 = vmatpush1.msra.mxu0 0.0
    %522 = vmatprep.subr.mxu0 0.0
    %523 = vmatpush1.msra.mxu0 0.0
    %524 = vmatprep.subr.mxu0 0.0
    %525 = vmatpush1.msra.mxu0 0.0
    %526 = vmatprep.subr.mxu0 0.0
    %527 = vmatpush1.msra.mxu0 0.0
    %528 = vmatprep.subr.mxu0 0.0
    %529 = vmatpush1.msra.mxu0 0.0
    %530 = vmatprep.subr.mxu0 0.0
    %531 = vmatpush1.msra.mxu0 0.0
    %532 = vmatprep.subr.mxu0 0.0
    %533 = vmatpush1.msra.mxu0 0.0
    %534 = vmatprep.subr.mxu0 0.0
    %535 = vmatpush1.msra.mxu0 0.0
    %536 = vmatprep.subr.mxu0 0.0
    %537 = vmatpush1.msra.mxu0 0.0
    %538 = vmatprep.subr.mxu0 0.0
    %539 = vmatpush1.msra.mxu0 0.0
    %540 = vmatprep.subr.mxu0 0.0
    %541 = vmatpush1.msra.mxu0 0.0
    %542 = vmatprep.mubr.f32.mxu0 0.0
    %543 = vmatmul.mubr.f32.gmra.mrb[0].mxu0 %v476
    %v544 = vpop.f32.mrb[0].mxu0
    %v545 = vadd.f32 0.0, %v544
    %v546 = vpop.f32.mrb[0].mxu0
    %547 = vdwg.mxu0
    %v548 = vadd.f32 %v140, %v545
    %v549 = vmax.f32 %v548, 0.0
    %v550 = vld [vmem:[%s8] sm:$0xff]
    %v551 = vld [vmem:[%s8 + $0x8] sm:$0xff]
    %v552 = vld [vmem:[%s8 + $0x10] sm:$0xff]
    %v553 = vld [vmem:[%s8 + $0x18] sm:$0xff]
    %v554 = vld [vmem:[%s8 + $0x20] sm:$0xff]
    %v555 = vld [vmem:[%s8 + $0x28] sm:$0xff]
    %v556 = vld [vmem:[%s8 + $0x30] sm:$0xff]
    %v557 = vld [vmem:[%s8 + $0x38] sm:$0xff]
    %v558 = vld [vmem:[%s8 + $0x40] sm:$0xff]
    %v559 = vld [vmem:[%s8 + $0x48] sm:$0xff]
    %v560 = vld [vmem:[%s8 + $0x50] sm:$0xff]
    %v561 = vld [vmem:[%s8 + $0x58] sm:$0xff]
    %v562 = vld [vmem:[%s8 + $0x60] sm:$0xff]
    %v563 = vld [vmem:[%s8 + $0x68] sm:$0xff]
    %v564 = vld [vmem:[%s8 + $0x70] sm:$0xff]
    %v565 = vld [vmem:[%s8 + $0x78] sm:$0xff]
    %v566 = vld [vmem:[%s8 + $0x80] sm:$0xff]
    %v567 = vld [vmem:[%s8 + $0x88] sm:$0xff]
    %v568 = vld [vmem:[%s8 + $0x90] sm:$0xff]
    %v569 = vld [vmem:[%s8 + $0x98] sm:$0xff]
    %v570 = vld [vmem:[%s8 + $0xa0] sm:$0xff]
    %v571 = vld [vmem:[%s8 + $0xa8] sm:$0xff]
    %v572 = vld [vmem:[%s8 + $0xb0] sm:$0xff]
    %v573 = vld [vmem:[%s8 + $0xb8] sm:$0xff]
    %v574 = vld [vmem:[%s8 + $0xc0] sm:$0xff]
    %v575 = vld [vmem:[%s8 + $0xc8] sm:$0xff]
    %v576 = vld [vmem:[%s8 + $0xd0] sm:$0xff]
    %v577 = vld [vmem:[%s8 + $0xd8] sm:$0xff]
    %v578 = vld [vmem:[%s8 + $0xe0] sm:$0xff]
    %v579 = vld [vmem:[%s8 + $0xe8] sm:$0xff]
    %v580 = vld [vmem:[%s8 + $0xf0] sm:$0xff]
    %v581 = vld [vmem:[%s8 + $0xf8] sm:$0xff]
    %v582 = vld [vmem:[%s8 + $0x100] sm:$0xff]
    %v583 = vld [vmem:[%s8 + $0x108] sm:$0xff]
    %v584 = vld [vmem:[%s8 + $0x110] sm:$0xff]
    %v585 = vld [vmem:[%s8 + $0x118] sm:$0xff]
    %v586 = vld [vmem:[%s8 + $0x120] sm:$0xff]
    %v587 = vld [vmem:[%s8 + $0x128] sm:$0xff]
    %v588 = vld [vmem:[%s8 + $0x130] sm:$0xff]
    %v589 = vld [vmem:[%s8 + $0x138] sm:$0xff]
    %v590 = vld [vmem:[%s8 + $0x140] sm:$0xff]
    %v591 = vld [vmem:[%s8 + $0x148] sm:$0xff]
    %v592 = vld [vmem:[%s8 + $0x150] sm:$0xff]
    %v593 = vld [vmem:[%s8 + $0x158] sm:$0xff]
    %v594 = vld [vmem:[%s8 + $0x160] sm:$0xff]
    %v595 = vld [vmem:[%s8 + $0x168] sm:$0xff]
    %v596 = vld [vmem:[%s8 + $0x170] sm:$0xff]
    %v597 = vld [vmem:[%s8 + $0x178] sm:$0xff]
    %v598 = vld [vmem:[%s9] sm:$0x7]
    %v600 = vlaneseq
    %v601 = vshrl.u32 %v600, 7
    %v602 = vsub.s32 0, %v601
    %v603 = vrot.slane %v598, %v602
    %v604 = vlaneseq
    %v605 = vshrl.u32 %v604, 7
    %v606 = vsub.s32 1, %v605
    %v607 = vrot.slane %v598, %v606
    %v608 = vlaneseq
    %v609 = vshrl.u32 %v608, 7
    %v610 = vsub.s32 2, %v609
    %v611 = vrot.slane %v598, %v610
    %615 = vmatprep.subr.mxu0 %v551
    %616 = vmatpush1.msra.mxu0 %v550
    %617 = vmatprep.subr.mxu0 %v554
    %618 = vmatpush1.msra.mxu0 %v553
    %619 = vmatprep.subr.mxu0 %v557
    %620 = vmatpush1.msra.mxu0 %v556
    %621 = vmatprep.subr.mxu0 %v560
    %622 = vmatpush1.msra.mxu0 %v559
    %623 = vmatprep.subr.mxu0 %v563
    %624 = vmatpush1.msra.mxu0 %v562
    %625 = vmatprep.subr.mxu0 %v566
    %626 = vmatpush1.msra.mxu0 %v565
    %627 = vmatprep.subr.mxu0 %v569
    %628 = vmatpush1.msra.mxu0 %v568
    %629 = vmatprep.subr.mxu0 %v572
    %630 = vmatpush1.msra.mxu0 %v571
    %631 = vmatprep.subr.mxu0 %v575
    %632 = vmatpush1.msra.mxu0 %v574
    %633 = vmatprep.subr.mxu0 %v578
    %634 = vmatpush1.msra.mxu0 %v577
    %635 = vmatprep.subr.mxu0 %v581
    %636 = vmatpush1.msra.mxu0 %v580
    %637 = vmatprep.subr.mxu0 %v584
    %638 = vmatpush1.msra.mxu0 %v583
    %639 = vmatprep.subr.mxu0 %v587
    %640 = vmatpush1.msra.mxu0 %v586
    %641 = vmatprep.subr.mxu0 %v590
    %642 = vmatpush1.msra.mxu0 %v589
    %643 = vmatprep.subr.mxu0 %v593
    %644 = vmatpush1.msra.mxu0 %v592
    %645 = vmatprep.subr.mxu0 %v596
    %646 = vmatpush1.msra.mxu0 %v595
    %647 = vmatprep.subr.mxu0 0.0
    %648 = vmatpush1.msra.mxu0 0.0
    %649 = vmatprep.subr.mxu0 0.0
    %650 = vmatpush1.msra.mxu0 0.0
    %651 = vmatprep.subr.mxu0 0.0
    %652 = vmatpush1.msra.mxu0 0.0
    %653 = vmatprep.subr.mxu0 0.0
    %654 = vmatpush1.msra.mxu0 0.0
    %655 = vmatprep.subr.mxu0 0.0
    %656 = vmatpush1.msra.mxu0 0.0
    %657 = vmatprep.subr.mxu0 0.0
    %658 = vmatpush1.msra.mxu0 0.0
    %659 = vmatprep.subr.mxu0 0.0
    %660 = vmatpush1.msra.mxu0 0.0
    %661 = vmatprep.subr.mxu0 0.0
    %662 = vmatpush1.msra.mxu0 0.0
    %663 = vmatprep.subr.mxu0 0.0
    %664 = vmatpush1.msra.mxu0 0.0
    %665 = vmatprep.subr.mxu0 0.0
    %666 = vmatpush1.msra.mxu0 0.0
    %667 = vmatprep.subr.mxu0 0.0
    %668 = vmatpush1.msra.mxu0 0.0
    %669 = vmatprep.subr.mxu0 0.0
    %670 = vmatpush1.msra.mxu0 0.0
    %671 = vmatprep.subr.mxu0 0.0
    %672 = vmatpush1.msra.mxu0 0.0
    %673 = vmatprep.subr.mxu0 0.0
    %674 = vmatpush1.msra.mxu0 0.0
    %675 = vmatprep.subr.mxu0 0.0
    %676 = vmatpush1.msra.mxu0 0.0
    %677 = vmatprep.subr.mxu0 0.0
    %678 = vmatpush1.msra.mxu0 0.0
    %679 = vmatprep.mubr.f32.mxu0 0.0
    %680 = vmatmul.mubr.f32.gmra.mrb[0].mxu0 %v549
    %v681 = vpop.f32.mrb[0].mxu0
    %v682 = vadd.f32 %v603, %v681
    %v683 = vpop.f32.mrb[0].mxu0
    %v684 = vadd.f32 %v607, %v683
    %685 = vdwg.mxu0
    %686 = vmatprep.subr.mxu0 0.0
    %687 = vmatpush1.msra.mxu0 %v552
    %688 = vmatprep.subr.mxu0 0.0
    %689 = vmatpush1.msra.mxu0 %v555
    %690 = vmatprep.subr.mxu0 0.0
    %691 = vmatpush1.msra.mxu0 %v558
    %692 = vmatprep.subr.mxu0 0.0
    %693 = vmatpush1.msra.mxu0 %v561
    %694 = vmatprep.subr.mxu0 0.0
    %695 = vmatpush1.msra.mxu0 %v564
    %696 = vmatprep.subr.mxu0 0.0
    %697 = vmatpush1.msra.mxu0 %v567
    %698 = vmatprep.subr.mxu0 0.0
    %699 = vmatpush1.msra.mxu0 %v570
    %700 = vmatprep.subr.mxu0 0.0
    %701 = vmatpush1.msra.mxu0 %v573
    %702 = vmatprep.subr.mxu0 0.0
    %703 = vmatpush1.msra.mxu0 %v576
    %704 = vmatprep.subr.mxu0 0.0
    %705 = vmatpush1.msra.mxu0 %v579
    %706 = vmatprep.subr.mxu0 0.0
    %707 = vmatpush1.msra.mxu0 %v582
    %708 = vmatprep.subr.mxu0 0.0
    %709 = vmatpush1.msra.mxu0 %v585
    %710 = vmatprep.subr.mxu0 0.0
    %711 = vmatpush1.msra.mxu0 %v588
    %712 = vmatprep.subr.mxu0 0.0
    %713 = vmatpush1.msra.mxu0 %v591
    %714 = vmatprep.subr.mxu0 0.0
    %715 = vmatpush1.msra.mxu0 %v594
    %716 = vmatprep.subr.mxu0 0.0
    %717 = vmatpush1.msra.mxu0 %v597
    %718 = vmatprep.subr.mxu0 0.0
    %719 = vmatpush1.msra.mxu0 0.0
    %720 = vmatprep.subr.mxu0 0.0
    %721 = vmatpush1.msra.mxu0 0.0
    %722 = vmatprep.subr.mxu0 0.0
    %723 = vmatpush1.msra.mxu0 0.0
    %724 = vmatprep.subr.mxu0 0.0
    %725 = vmatpush1.msra.mxu0 0.0
    %726 = vmatprep.subr.mxu0 0.0
    %727 = vmatpush1.msra.mxu0 0.0
    %728 = vmatprep.subr.mxu0 0.0
    %729 = vmatpush1.msra.mxu0 0.0
    %730 = vmatprep.subr.mxu0 0.0
    %731 = vmatpush1.msra.mxu0 0.0
    %732 = vmatprep.subr.mxu0 0.0
    %733 = vmatpush1.msra.mxu0 0.0
    %734 = vmatprep.subr.mxu0 0.0
    %735 = vmatpush1.msra.mxu0 0.0
    %736 = vmatprep.subr.mxu0 0.0
    %737 = vmatpush1.msra.mxu0 0.0
    %738 = vmatprep.subr.mxu0 0.0
    %739 = vmatpush1.msra.mxu0 0.0
    %740 = vmatprep.subr.mxu0 0.0
    %741 = vmatpush1.msra.mxu0 0.0
    %742 = vmatprep.subr.mxu0 0.0
    %743 = vmatpush1.msra.mxu0 0.0
    %744 = vmatprep.subr.mxu0 0.0
    %745 = vmatpush1.msra.mxu0 0.0
    %746 = vmatprep.subr.mxu0 0.0
    %747 = vmatpush1.msra.mxu0 0.0
    %748 = vmatprep.subr.mxu0 0.0
    %749 = vmatpush1.msra.mxu0 0.0
    %750 = vmatprep.mubr.f32.mxu0 0.0
    %751 = vmatmul.mubr.f32.gmra.mrb[0].mxu0 %v549
    %v752 = vpop.f32.mrb[0].mxu0
    %v753 = vadd.f32 %v611, %v752
    %v754 = vpop.f32.mrb[0].mxu0
    %755 = vdwg.mxu0
    %v756 = vadd.f32 %v682, %v298
    %v757 = vxor.u32 %v756, 2147483648
    %v758 = vmul.f32 %v757, 1.442695
    %v759 = vpow.pop %v758
    %v760 = vadd.f32 %v759, 1.0
    %v761 = vrcp.pop %v760
    %v762 = vmul.f32 1.0, %v761
    %v763 = vadd.f32 %v684, %v367
    %v764 = vxor.u32 %v763, 2147483648
    %v765 = vmul.f32 %v764, 1.442695
    %v766 = vpow.pop %v765
    %v767 = vadd.f32 %v766, 1.0
    %v768 = vrcp.pop %v767
    %v769 = vmul.f32 1.0, %v768
    %v770 = vmul.f32 %v762, %v369
    %v771 = vadd.f32 %v753, %v770
    %v772 = vtanh.pop %v771
    %v773 = vsub.f32 1.0, %v769
    %v774 = vmul.f32 %v773, %v772
    %v775 = vmul.f32 %v769, %v142
    %v776 = vadd.f32 %v774, %v775
    %777 = vst [vmem:[#allocation2] sm:$0x1] %v776
    %778 = vst [vmem:[%s13] sm:$0x1] %v776
    %v779 = vld [vmem:[#allocation2] sm:$0x1]
    %v780 = vld [vmem:[%s10] sm:$0xff]
    %v781 = vld [vmem:[%s10 + $0x8] sm:$0xff]
    %v782 = vld [vmem:[%s10 + $0x10] sm:$0xff]
    %v783 = vld [vmem:[%s10 + $0x18] sm:$0xff]
    %v784 = vld [vmem:[%s10 + $0x20] sm:$0xff]
    %v785 = vld [vmem:[%s10 + $0x28] sm:$0xff]
    %v786 = vld [vmem:[%s10 + $0x30] sm:$0xff]
    %v787 = vld [vmem:[%s10 + $0x38] sm:$0xff]
    %v788 = vld [vmem:[%s10 + $0x40] sm:$0xff]
    %v789 = vld [vmem:[%s10 + $0x48] sm:$0xff]
    %v790 = vld [vmem:[%s10 + $0x50] sm:$0xff]
    %v791 = vld [vmem:[%s10 + $0x58] sm:$0xff]
    %v792 = vld [vmem:[%s10 + $0x60] sm:$0xff]
    %v793 = vld [vmem:[%s10 + $0x68] sm:$0xff]
    %v794 = vld [vmem:[%s10 + $0x70] sm:$0xff]
    %v795 = vld [vmem:[%s10 + $0x78] sm:$0xff]
    %v796 = vld [vmem:[%s11] sm:$0x1]
    %797 = vmatprep.subr.mxu0 0.0
    %798 = vmatpush1.msra.mxu0 %v780
    %799 = vmatprep.subr.mxu0 0.0
    %800 = vmatpush1.msra.mxu0 %v781
    %801 = vmatprep.subr.mxu0 0.0
    %802 = vmatpush1.msra.mxu0 %v782
    %803 = vmatprep.subr.mxu0 0.0
    %804 = vmatpush1.msra.mxu0 %v783
    %805 = vmatprep.subr.mxu0 0.0
    %806 = vmatpush1.msra.mxu0 %v784
    %807 = vmatprep.subr.mxu0 0.0
    %808 = vmatpush1.msra.mxu0 %v785
    %809 = vmatprep.subr.mxu0 0.0
    %810 = vmatpush1.msra.mxu0 %v786
    %811 = vmatprep.subr.mxu0 0.0
    %812 = vmatpush1.msra.mxu0 %v787
    %813 = vmatprep.subr.mxu0 0.0
    %814 = vmatpush1.msra.mxu0 %v788
    %815 = vmatprep.subr.mxu0 0.0
    %816 = vmatpush1.msra.mxu0 %v789
    %817 = vmatprep.subr.mxu0 0.0
    %818 = vmatpush1.msra.mxu0 %v790
    %819 = vmatprep.subr.mxu0 0.0
    %820 = vmatpush1.msra.mxu0 %v791
    %821 = vmatprep.subr.mxu0 0.0
    %822 = vmatpush1.msra.mxu0 %v792
    %823 = vmatprep.subr.mxu0 0.0
    %824 = vmatpush1.msra.mxu0 %v793
    %825 = vmatprep.subr.mxu0 0.0
    %826 = vmatpush1.msra.mxu0 %v794
    %827 = vmatprep.subr.mxu0 0.0
    %828 = vmatpush1.msra.mxu0 %v795
    %829 = vmatprep.subr.mxu0 0.0
    %830 = vmatpush1.msra.mxu0 0.0
    %831 = vmatprep.subr.mxu0 0.0
    %832 = vmatpush1.msra.mxu0 0.0
    %833 = vmatprep.subr.mxu0 0.0
    %834 = vmatpush1.msra.mxu0 0.0
    %835 = vmatprep.subr.mxu0 0.0
    %836 = vmatpush1.msra.mxu0 0.0
    %837 = vmatprep.subr.mxu0 0.0
    %838 = vmatpush1.msra.mxu0 0.0
    %839 = vmatprep.subr.mxu0 0.0
    %840 = vmatpush1.msra.mxu0 0.0
    %841 = vmatprep.subr.mxu0 0.0
    %842 = vmatpush1.msra.mxu0 0.0
    %843 = vmatprep.subr.mxu0 0.0
    %844 = vmatpush1.msra.mxu0 0.0
    %845 = vmatprep.subr.mxu0 0.0
    %846 = vmatpush1.msra.mxu0 0.0
    %847 = vmatprep.subr.mxu0 0.0
    %848 = vmatpush1.msra.mxu0 0.0
    %849 = vmatprep.subr.mxu0 0.0
    %850 = vmatpush1.msra.mxu0 0.0
    %851 = vmatprep.subr.mxu0 0.0
    %852 = vmatpush1.msra.mxu0 0.0
    %853 = vmatprep.subr.mxu0 0.0
    %854 = vmatpush1.msra.mxu0 0.0
    %855 = vmatprep.subr.mxu0 0.0
    %856 = vmatpush1.msra.mxu0 0.0
    %857 = vmatprep.subr.mxu0 0.0
    %858 = vmatpush1.msra.mxu0 0.0
    %859 = vmatprep.subr.mxu0 0.0
    %860 = vmatpush1.msra.mxu0 0.0
    %861 = vmatprep.mubr.f32.mxu0 0.0
    %862 = vmatmul.mubr.f32.gmra.mrb[0].mxu0 %v779
    %v863 = vpop.f32.mrb[0].mxu0
    %v864 = vadd.f32 %v796, %v863
    %v865 = vpop.f32.mrb[0].mxu0
    %866 = vdwg.mxu0
    %v867 = vsel %vm372, %v864, -inf
    %868 = vmax.xlane.f32.xlu0 %v867
    %v869 = vpop.xlane.xlu0 %868
    %v870 = vsub.f32 %v864, %v869
    %v871 = vmul.f32 %v870, 1.442695
    %v872 = vpow.pop %v871
    %v873 = vsel %vm372, %v872, 0.0
    %874 = vadd.xlane.f32.xlu0 %v873
    %v875 = vpop.xlane.xlu0 %874
    %v876 = vlog2.pop %v875
    %v877 = vmul.f32 %v876, 0.6931472
    %v878 = vsub.f32 %v870, %v877
    %879 = vst [vmem:[#allocation3] sm:$0x1] %v878
    // Predicated region
    $region50: #{atten_decoder_decode.1} parent=1 // pred_check
      _
    $region51: #{atten_decoder_decode.1} parent=1 // pred_check_branch
      %881 = sbr.rel (0) target = $region53
    $region52: #{atten_decoder_decode.1} parent=1 // pred_region
      %s883 = ssub.s32 16, 16
      %884 = vsyncadd [#allocation4], %s883
      %s886 = sshll.u32 [#allocation3], 4
      %s887 = int_to_ptr.vmem [resolvable:$true] %s886
      %889 = dma.vmem_to_hbm [thread:$0]  %s887, 16, %s12, [#allocation4]
    $region53: #{atten_decoder_decode.1} parent=1 // pred_fallthru
      _
    // Predicated region
    $region54: #{atten_decoder_decode.1} parent=1 // pred_check
      _
    $region55: #{atten_decoder_decode.1} parent=1 // pred_check_branch
      %891 = sbr.rel (0) target = $region57
    $region56: #{atten_decoder_decode.1} parent=1 // pred_region
      _
    $region57: #{atten_decoder_decode.1} parent=1 // pred_fallthru
      _
    // Predicated region
    $region58: #{atten_decoder_decode.1} parent=1 // pred_check
      _
    $region59: #{atten_decoder_decode.1} parent=1 // pred_check_branch
      %893 = sbr.rel (0) target = $region61
    $region60: #{atten_decoder_decode.1} parent=1 // pred_region
      %s895 = ssub.s32 16, 16
      %896 = vsyncadd [#allocation6], %s895
      %s898 = sshll.u32 [#allocation5], 4
      %s899 = int_to_ptr.vmem [resolvable:$true] %s898
      %901 = dma.vmem_to_hbm [thread:$0]  %s899, 16, %s14, [#allocation6]
    $region61: #{atten_decoder_decode.1} parent=1 // pred_fallthru
      _
    // Predicated region
    $region62: #{atten_decoder_decode.1} parent=1 // pred_check
      _
    $region63: #{atten_decoder_decode.1} parent=1 // pred_check_branch
      %903 = sbr.rel (0) target = $region65
    $region64: #{atten_decoder_decode.1} parent=1 // pred_region
      %904 = dma.done [#allocation4], 16
    $region65: #{atten_decoder_decode.1} parent=1 // pred_fallthru
      _
    // Predicated region
    $region66: #{atten_decoder_decode.1} parent=1 // pred_check
      _
    $region67: #{atten_decoder_decode.1} parent=1 // pred_check_branch
      %906 = sbr.rel (0) target = $region69
    $region68: #{atten_decoder_decode.1} parent=1 // pred_region
      _
    $region69: #{atten_decoder_decode.1} parent=1 // pred_fallthru
      _
    // Predicated region
    $region70: #{atten_decoder_decode.1} parent=1 // pred_check
      _
    $region71: #{atten_decoder_decode.1} parent=1 // pred_check_branch
      %908 = sbr.rel (0) target = $region73
    $region72: #{atten_decoder_decode.1} parent=1 // pred_region
      %909 = dma.done [#allocation6], 16
    $region73: #{atten_decoder_decode.1} parent=1 // pred_fallthru
      _
    %910 = vsyncpa [#allocation4], 1
    %911 = vsyncpa [#allocation6], 1

</llo_original>
